<compile_context>
chip_gen: v7x
topology: tpu7x:2x2x1
jax: 0.10.0
libtpu: 0.0.40
codegen_flags: <defaults>
</compile_context>

<pallas_src>
import jax
import jax.numpy as jnp
from jax.experimental import pallas as pl
from jax.experimental.pallas import tpu as pltpu

HIDDEN = 256
LEAKY_SLOPE = 0.01  # PyTorch F.leaky_relu default negative_slope


def _round_up(n, m):
    return ((n + m - 1) // m) * m


def _leaky_relu(x):
    return jnp.where(x > 0, x, LEAKY_SLOPE * x)


def _sigmoid(x):
    # Mathematically identical to 1/(1+exp(-x)); a single EUP tanh.
    return 0.5 * jnp.tanh(0.5 * x) + 0.5


def temp_mlp_kernel(x_ref,
                    w1_ref, b1_ref,
                    w2_ref, b2_ref,
                    w3_ref, b3_ref,
                    w4_ref, b4_ref,
                    out_ref):
    # One batch tile per grid step: 4 MXU matmuls with f32 accumulation,
    # activations in the compute (weight) dtype, biases broadcast from (1, N).
    cdt = w1_ref.dtype  # compute dtype (bf16 on v6e/v7x fast path, else f32)

    def lin(h, w_ref, b_ref):
        return jnp.dot(h, w_ref[...],
                       preferred_element_type=jnp.float32) + b_ref[...]

    x = x_ref[...].astype(cdt)
    h = _leaky_relu(lin(x, w1_ref, b1_ref).astype(cdt))
    h = _sigmoid(lin(h, w2_ref, b2_ref).astype(cdt))
    h = _leaky_relu(lin(h, w3_ref, b3_ref).astype(cdt))
    out_ref[...] = lin(h, w4_ref, b4_ref).astype(out_ref.dtype)


def _pick_tm(B):
    """Batch tile: >=2 grid steps when B > 8 (v7x megacore), up to 2048 rows."""
    if B <= 8:
        return 8
    if B <= 4096:
        return _round_up(pl.cdiv(B, 2), 8 if B <= 256 else 128)
    return 2048


def temp_forward(x, params, *, tm=None):
    """x: (B, input_dim), f32 or bf16. params: weights (in, out), biases (1, out).

    Weights may be float32 or bfloat16 (bf16 recommended on v6e/v7x); biases
    stay float32 and all matmul accumulation is f32.
    """
    B, input_dim = x.shape
    out_dim = params["w4"].shape[1]

    if tm is None:
        tm = _pick_tm(B)
    grid = (pl.cdiv(B, tm),)

    def resident(shape):
        # Constant block index -> parameter stays VMEM-resident across steps.
        return pl.BlockSpec(shape, lambda i: (0, 0))

    param_bytes = sum(int(v.size) * v.dtype.itemsize for v in params.values())
    cost = pl.CostEstimate(
        flops=2 * B * (input_dim * HIDDEN + 2 * HIDDEN * HIDDEN
                       + HIDDEN * out_dim),
        transcendentals=B * HIDDEN,  # one tanh per sigmoid element
        bytes_accessed=int(x.size) * x.dtype.itemsize
        + B * out_dim * 4 + param_bytes,
    )

    return pl.pallas_call(
        temp_mlp_kernel,
        out_shape=jax.ShapeDtypeStruct((B, out_dim), jnp.float32),
        grid=grid,
        in_specs=[
            # Batch-tiled input: last dim kept at the true input_dim (legal:
            # block dim == full array dim), ragged last tile handled by Pallas.
            pl.BlockSpec((tm, input_dim), lambda i: (i, 0)),
            resident(params["w1"].shape), resident(params["b1"].shape),
            resident(params["w2"].shape), resident(params["b2"].shape),
            resident(params["w3"].shape), resident(params["b3"].shape),
            resident(params["w4"].shape), resident(params["b4"].shape),
        ],
        # Unpadded output block (masked vst for out_dim<128) beats a padded
        # f32 store + separate slice kernel at these sizes.
        out_specs=pl.BlockSpec((tm, out_dim), lambda i: (i, 0)),
        compiler_params=pltpu.CompilerParams(
            dimension_semantics=("parallel",),
            vmem_limit_bytes=32 * 1024 * 1024,
        ),
        cost_estimate=cost,
    )(x,
      params["w1"], params["b1"],
      params["w2"], params["b2"],
      params["w3"], params["b3"],
      params["w4"], params["b4"])


def init_params(key, input_dim, output_dim, weights_dtype=jnp.float32):
    """Deterministic init mimicking nn.Linear (uniform +-1/sqrt(fan_in)).
    Weights stored as (in_features, out_features); biases as (1, out_features).
    Pass weights_dtype=jnp.bfloat16 for the v6e/v7x MXU fast path."""
    dims = [(input_dim, HIDDEN), (HIDDEN, HIDDEN), (HIDDEN, HIDDEN),
            (HIDDEN, output_dim)]
    params = {}
    for i, (fin, fout) in enumerate(dims, start=1):
        key, kw, kb = jax.random.split(key, 3)
        bound = 1.0 / jnp.sqrt(jnp.float32(fin))
        params[f"w{i}"] = jax.random.uniform(
            kw, (fin, fout), jnp.float32, -bound, bound).astype(weights_dtype)
        params[f"b{i}"] = jax.random.uniform(
            kb, (1, fout), jnp.float32, -bound, bound)
    return params


def temp_forward_ref(x, params):
    """Pure-JAX reference mirroring the kernel's mixed-precision rules."""
    cdt = params["w1"].dtype

    def lin(h, w, b):
        return jnp.dot(h, w, preferred_element_type=jnp.float32) + b

    x = x.astype(cdt)
    h = _leaky_relu(lin(x, params["w1"], params["b1"]).astype(cdt))
    h = _sigmoid(lin(h, params["w2"], params["b2"]).astype(cdt))
    h = _leaky_relu(lin(h, params["w3"], params["b3"]).astype(cdt))
    return lin(h, params["w4"], params["b4"])


if __name__ == "__main__":
    INPUT_DIM, OUTPUT_DIM = 32, 16

    key = jax.random.PRNGKey(0)
    key, kx = jax.random.split(key)

    # --- f32-weight path, B=64 -> TM=32, 2 grid steps ---
    B = 64
    x = jax.random.normal(kx, (B, INPUT_DIM), jnp.float32)
    params = init_params(key, INPUT_DIM, OUTPUT_DIM)
    y = jax.block_until_ready(temp_forward(x, params))
    y_ref = temp_forward_ref(x, params)
    assert y.shape == (B, OUTPUT_DIM)
    assert jnp.allclose(y, y_ref, atol=5e-4, rtol=5e-4)

    # --- ragged batch (B not a multiple of 8 or of the tile) ---
    B2 = 50
    x2 = x[:B2]
    y2 = jax.block_until_ready(temp_forward(x2, params))
    assert y2.shape == (B2, OUTPUT_DIM)
    assert jnp.allclose(y2, y_ref[:B2], atol=5e-4, rtol=5e-4)

    # --- bf16-weight fast path (v6e/v7x) with a forced small tile:
    #     tm=16 -> 4 grid steps, ragged last tile, weight-resident pipeline ---
    params_bf16 = {k: (v.astype(jnp.bfloat16) if k.startswith("w") else v)
                   for k, v in params.items()}
    y_bf = jax.block_until_ready(temp_forward(x2, params_bf16, tm=16))
    y_ref_bf = temp_forward_ref(x2, params_bf16)
    assert y_bf.shape == (B2, OUTPUT_DIM)
    assert jnp.allclose(y_bf, y_ref_bf, atol=2e-2, rtol=2e-2)

    print("KERNEL_OK")
</pallas_src>

<mosaic_0001>
module attributes {stable_mosaic.version = 11 : i64} {
  func.func @temp_mlp_kernel(%arg0: i32, %arg1: memref<32x32xf32, #tpu.memory_space<vmem>>, %arg2: memref<32x256xf32, #tpu.memory_space<vmem>>, %arg3: memref<1x256xf32, #tpu.memory_space<vmem>>, %arg4: memref<256x256xf32, #tpu.memory_space<vmem>>, %arg5: memref<1x256xf32, #tpu.memory_space<vmem>>, %arg6: memref<256x256xf32, #tpu.memory_space<vmem>>, %arg7: memref<1x256xf32, #tpu.memory_space<vmem>>, %arg8: memref<256x16xf32, #tpu.memory_space<vmem>>, %arg9: memref<1x16xf32, #tpu.memory_space<vmem>>, %arg10: memref<32x16xf32, #tpu.memory_space<vmem>>) attributes {dimension_semantics = [#tpu.dimension_semantics<parallel>], iteration_bounds = array<i64: 2>, scalar_prefetch = 0 : i64, scratch_operands = 0 : i64, tpu.core_type = #tpu.core_type<tc>, window_params = [{transform_indices = @transform_0, window_bounds = array<i64: 32, 32>}, {pipeline_mode = #tpu.pipeline_mode<synchronous>, transform_indices = @transform_1, window_bounds = array<i64: 32, 256>}, {pipeline_mode = #tpu.pipeline_mode<synchronous>, transform_indices = @transform_2, window_bounds = array<i64: 1, 256>}, {pipeline_mode = #tpu.pipeline_mode<synchronous>, transform_indices = @transform_3, window_bounds = array<i64: 256, 256>}, {pipeline_mode = #tpu.pipeline_mode<synchronous>, transform_indices = @transform_4, window_bounds = array<i64: 1, 256>}, {pipeline_mode = #tpu.pipeline_mode<synchronous>, transform_indices = @transform_5, window_bounds = array<i64: 256, 256>}, {pipeline_mode = #tpu.pipeline_mode<synchronous>, transform_indices = @transform_6, window_bounds = array<i64: 1, 256>}, {pipeline_mode = #tpu.pipeline_mode<synchronous>, transform_indices = @transform_7, window_bounds = array<i64: 256, 16>}, {pipeline_mode = #tpu.pipeline_mode<synchronous>, transform_indices = @transform_8, window_bounds = array<i64: 1, 16>}, {transform_indices = @transform_9, window_bounds = array<i64: 32, 16>}]} {
    %c0 = arith.constant 0 : index
    %c0_0 = arith.constant 0 : index
    %0 = vector.load %arg1[%c0, %c0_0] : memref<32x32xf32, #tpu.memory_space<vmem>>, vector<32x32xf32>
    %c0_1 = arith.constant 0 : index
    %c0_2 = arith.constant 0 : index
    %1 = vector.load %arg2[%c0_1, %c0_2] : memref<32x256xf32, #tpu.memory_space<vmem>>, vector<32x256xf32>
    %cst = arith.constant dense<0.000000e+00> : vector<32x256xf32>
    %2 = tpu.matmul %0, %1, %cst {dimension_numbers = #tpu.dot_dimension_numbers<[1], [0], [0], [1], [0, 0, 1, 1], [], []>} : vector<32x32xf32>, vector<32x256xf32>, vector<32x256xf32> -> vector<32x256xf32>
    %c0_3 = arith.constant 0 : index
    %c0_4 = arith.constant 0 : index
    %3 = vector.load %arg3[%c0_3, %c0_4] : memref<1x256xf32, #tpu.memory_space<vmem>>, vector<1x256xf32>
    %4 = vector.broadcast %3 : vector<1x256xf32> to vector<32x256xf32>
    %5 = arith.addf %2, %4 : vector<32x256xf32>
    %cst_5 = arith.constant 0.000000e+00 : f32
    %6 = vector.broadcast %cst_5 : f32 to vector<32x256xf32>
    %7 = arith.cmpf ogt, %5, %6 : vector<32x256xf32>
    %cst_6 = arith.constant 0.00999999977 : f32
    %8 = vector.broadcast %cst_6 : f32 to vector<32x256xf32>
    %9 = arith.mulf %8, %5 : vector<32x256xf32>
    %10 = arith.select %7, %5, %9 : vector<32x256xi1>, vector<32x256xf32>
    %c0_7 = arith.constant 0 : index
    %c0_8 = arith.constant 0 : index
    %11 = vector.load %arg4[%c0_7, %c0_8] : memref<256x256xf32, #tpu.memory_space<vmem>>, vector<256x256xf32>
    %cst_9 = arith.constant dense<0.000000e+00> : vector<32x256xf32>
    %12 = tpu.matmul %10, %11, %cst_9 {dimension_numbers = #tpu.dot_dimension_numbers<[1], [0], [0], [1], [0, 0, 1, 1], [], []>} : vector<32x256xf32>, vector<256x256xf32>, vector<32x256xf32> -> vector<32x256xf32>
    %c0_10 = arith.constant 0 : index
    %c0_11 = arith.constant 0 : index
    %13 = vector.load %arg5[%c0_10, %c0_11] : memref<1x256xf32, #tpu.memory_space<vmem>>, vector<1x256xf32>
    %14 = vector.broadcast %13 : vector<1x256xf32> to vector<32x256xf32>
    %15 = arith.addf %12, %14 : vector<32x256xf32>
    %cst_12 = arith.constant 5.000000e-01 : f32
    %16 = vector.broadcast %cst_12 : f32 to vector<32x256xf32>
    %17 = arith.mulf %16, %15 : vector<32x256xf32>
    %18 = math.tanh %17 : vector<32x256xf32>
    %cst_13 = arith.constant 5.000000e-01 : f32
    %19 = vector.broadcast %cst_13 : f32 to vector<32x256xf32>
    %20 = arith.mulf %19, %18 : vector<32x256xf32>
    %cst_14 = arith.constant 5.000000e-01 : f32
    %21 = vector.broadcast %cst_14 : f32 to vector<32x256xf32>
    %22 = arith.addf %20, %21 : vector<32x256xf32>
    %c0_15 = arith.constant 0 : index
    %c0_16 = arith.constant 0 : index
    %23 = vector.load %arg6[%c0_15, %c0_16] : memref<256x256xf32, #tpu.memory_space<vmem>>, vector<256x256xf32>
    %cst_17 = arith.constant dense<0.000000e+00> : vector<32x256xf32>
    %24 = tpu.matmul %22, %23, %cst_17 {dimension_numbers = #tpu.dot_dimension_numbers<[1], [0], [0], [1], [0, 0, 1, 1], [], []>} : vector<32x256xf32>, vector<256x256xf32>, vector<32x256xf32> -> vector<32x256xf32>
    %c0_18 = arith.constant 0 : index
    %c0_19 = arith.constant 0 : index
    %25 = vector.load %arg7[%c0_18, %c0_19] : memref<1x256xf32, #tpu.memory_space<vmem>>, vector<1x256xf32>
    %26 = vector.broadcast %25 : vector<1x256xf32> to vector<32x256xf32>
    %27 = arith.addf %24, %26 : vector<32x256xf32>
    %cst_20 = arith.constant 0.000000e+00 : f32
    %28 = vector.broadcast %cst_20 : f32 to vector<32x256xf32>
    %29 = arith.cmpf ogt, %27, %28 : vector<32x256xf32>
    %cst_21 = arith.constant 0.00999999977 : f32
    %30 = vector.broadcast %cst_21 : f32 to vector<32x256xf32>
    %31 = arith.mulf %30, %27 : vector<32x256xf32>
    %32 = arith.select %29, %27, %31 : vector<32x256xi1>, vector<32x256xf32>
    %c0_22 = arith.constant 0 : index
    %c0_23 = arith.constant 0 : index
    %33 = vector.load %arg8[%c0_22, %c0_23] : memref<256x16xf32, #tpu.memory_space<vmem>>, vector<256x16xf32>
    %cst_24 = arith.constant dense<0.000000e+00> : vector<32x16xf32>
    %34 = tpu.matmul %32, %33, %cst_24 {dimension_numbers = #tpu.dot_dimension_numbers<[1], [0], [0], [1], [0, 0, 1, 1], [], []>} : vector<32x256xf32>, vector<256x16xf32>, vector<32x16xf32> -> vector<32x16xf32>
    %c0_25 = arith.constant 0 : index
    %c0_26 = arith.constant 0 : index
    %35 = vector.load %arg9[%c0_25, %c0_26] : memref<1x16xf32, #tpu.memory_space<vmem>>, vector<1x16xf32>
    %36 = vector.broadcast %35 : vector<1x16xf32> to vector<32x16xf32>
    %37 = arith.addf %34, %36 : vector<32x16xf32>
    %c0_27 = arith.constant 0 : index
    %c0_28 = arith.constant 0 : index
    %38 = vector.load %arg10[%c0_27, %c0_28] : memref<32x16xf32, #tpu.memory_space<vmem>>, vector<32x16xf32>
    tpu.vector_store %arg10[%c0_27, %c0_28], %37 {strides = array<i32>} : memref<32x16xf32, #tpu.memory_space<vmem>>, vector<32x16xf32>,
    return
  }
  func.func @transform_0(%arg0: i32) -> (i32, i32) {
    %c0_i32 = arith.constant 0 : i32
    %c0_i32_0 = arith.constant 0 : i32
    return %arg0, %c0_i32 : i32, i32
  }
  func.func @transform_1(%arg0: i32) -> (i32, i32) {
    %c0_i32 = arith.constant 0 : i32
    %c0_i32_0 = arith.constant 0 : i32
    %c0_i32_1 = arith.constant 0 : i32
    return %c0_i32, %c0_i32_0 : i32, i32
  }
  func.func @transform_2(%arg0: i32) -> (i32, i32) {
    %c0_i32 = arith.constant 0 : i32
    %c0_i32_0 = arith.constant 0 : i32
    %c0_i32_1 = arith.constant 0 : i32
    return %c0_i32, %c0_i32_0 : i32, i32
  }
  func.func @transform_3(%arg0: i32) -> (i32, i32) {
    %c0_i32 = arith.constant 0 : i32
    %c0_i32_0 = arith.constant 0 : i32
    %c0_i32_1 = arith.constant 0 : i32
    return %c0_i32, %c0_i32_0 : i32, i32
  }
  func.func @transform_4(%arg0: i32) -> (i32, i32) {
    %c0_i32 = arith.constant 0 : i32
    %c0_i32_0 = arith.constant 0 : i32
    %c0_i32_1 = arith.constant 0 : i32
    return %c0_i32, %c0_i32_0 : i32, i32
  }
  func.func @transform_5(%arg0: i32) -> (i32, i32) {
    %c0_i32 = arith.constant 0 : i32
    %c0_i32_0 = arith.constant 0 : i32
    %c0_i32_1 = arith.constant 0 : i32
    return %c0_i32, %c0_i32_0 : i32, i32
  }
  func.func @transform_6(%arg0: i32) -> (i32, i32) {
    %c0_i32 = arith.constant 0 : i32
    %c0_i32_0 = arith.constant 0 : i32
    %c0_i32_1 = arith.constant 0 : i32
    return %c0_i32, %c0_i32_0 : i32, i32
  }
  func.func @transform_7(%arg0: i32) -> (i32, i32) {
    %c0_i32 = arith.constant 0 : i32
    %c0_i32_0 = arith.constant 0 : i32
    %c0_i32_1 = arith.constant 0 : i32
    return %c0_i32, %c0_i32_0 : i32, i32
  }
  func.func @transform_8(%arg0: i32) -> (i32, i32) {
    %c0_i32 = arith.constant 0 : i32
    %c0_i32_0 = arith.constant 0 : i32
    %c0_i32_1 = arith.constant 0 : i32
    return %c0_i32, %c0_i32_0 : i32, i32
  }
  func.func @transform_9(%arg0: i32) -> (i32, i32) {
    %c0_i32 = arith.constant 0 : i32
    %c0_i32_0 = arith.constant 0 : i32
    return %arg0, %c0_i32 : i32, i32
  }
}

</mosaic_0001>

<llo_original>
// kernel: tpu_custom_call.1
$region0: #{tpu_custom_call.1}
  #allocation0 [shape = 'u32[]', space=smem, size = 0x4, offset = 0x4, fixed_abs, tag = 'smem constant byte address 0x4 - core index']
  #allocation1 [shape = 'u32[144,128]{1,0:T(1,128)}', space=vmem, size = 0x12000, scoped, tag = 'internal scratch']
  %s0 = inlined_call_operand.vmem [shape: f32[64,32], index: 0, kind: input, shape index: {}]
  %s1 = inlined_call_operand.vmem [shape: f32[32,256], index: 1, kind: input, shape index: {}]
  %s2 = inlined_call_operand.vmem [shape: f32[1,256], index: 2, kind: input, shape index: {}]
  %s3 = inlined_call_operand.hbm [shape: f32[256,256], index: 3, kind: input, shape index: {}]
  %s4 = inlined_call_operand.vmem [shape: f32[1,256], index: 4, kind: input, shape index: {}]
  %s5 = inlined_call_operand.hbm [shape: f32[256,256], index: 5, kind: input, shape index: {}]
  %s6 = inlined_call_operand.vmem [shape: f32[1,256], index: 6, kind: input, shape index: {}]
  %s7 = inlined_call_operand.vmem [shape: f32[256,16], index: 7, kind: input, shape index: {}]
  %s8 = inlined_call_operand.vmem [shape: f32[1,16], index: 8, kind: input, shape index: {}]
  %s9 = inlined_call_operand.vmem [shape: f32[64,16], index: 9, kind: output, shape index: {}]
  %s10 = sld [smem:[#allocation0]]
  $region77: #{tpu_custom_call.1} parent=0
    _
  %s12 = ssub.s32 1, %s10
  %s13 = scalar_select 0, %s12, %s10
  $region1: #{tpu_custom_call.1} parent=0
    #allocation2 [shape = 'u8[262144]{0}', space=vmem, size = 0x40000, scoped, tag = 'input window, operand 3, single buffered']
    #allocation3 [shape = 's32[2]{0}', space=sflag, size = 0x8, scoped, tag = 'scoped memory for tpu_custom_call.1']
    #allocation4 [shape = 'u8[262144]{0}', space=vmem, size = 0x40000, scoped, tag = 'input window, operand 5, single buffered']
    #allocation5 [shape = 's32[1]{0}', space=sflag, size = 0x4, scoped, tag = 'scoped memory for tpu_custom_call.1']
    %14 = vsyncpa [#allocation3], 0
    %15 = vsyncpa [#allocation5], 0
    loop: start=0, step=1, limit=4
    $region2: #{tpu_custom_call.1} parent=1 // loop_pre_header
      _
    $region3: #{tpu_custom_call.1} parent=1 // loop_header
      %s17 = sphi 0, %s21
      %p18 = scmp.ge.s32.totalorder %s17, 4
      %s27 = sphi 0, %s29
      %s30 = sphi 0, %s27
      %s31 = sphi 0, %s30
      %s47 = sphi 0, %s31
      %s51 = sphi 0, %s51
      %s53 = sphi 0, %s51
      %s54 = sphi 0, %s53
      %s68 = sphi 0, %s54
      %s72 = sphi 0, %s72
      %s74 = sphi 0, %s72
      %s75 = sphi 0, %s74
      %s89 = sphi 0, %s75
      %s93 = sphi 0, %s93
      %s95 = sphi 0, %s93
      %s96 = sphi 0, %s95
      %s110 = sphi 0, %s96
      %s114 = sphi 0, %s114
      %s116 = sphi 0, %s114
      %s117 = sphi 0, %s116
      %s131 = sphi 0, %s117
      %s135 = sphi 0, %s135
      %s137 = sphi 0, %s135
      %s138 = sphi 0, %s137
      %s152 = sphi 0, %s138
      %s156 = sphi 0, %s156
      %s158 = sphi 0, %s156
      %s159 = sphi 0, %s158
      %s173 = sphi 0, %s159
      %s177 = sphi 0, %s177
      %s179 = sphi 0, %s177
      %s180 = sphi 0, %s179
      %s194 = sphi 0, %s180
      %s198 = sphi 0, %s198
      %s200 = sphi 0, %s198
      %s201 = sphi 0, %s200
      %s215 = sphi 0, %s201
      %s221 = sphi 0, %s223
      %s224 = sphi 0, %s221
      %s225 = sphi 0, %s224
      %s241 = sphi 0, %s225
    $region4: #{tpu_custom_call.1} parent=1 // loop_header_branch
      %20 = sbr.rel (%p18) target = $region8
    $region5: #{tpu_custom_call.1} parent=1 // loop_body
      %s22 = ssub.s32 %s17, 1
      %s23 = ssub.s32 %s17, 2
      %s24 = sadd.s32 %s17, 1
      %s25 = ssub.s32 %s17, %s24
      %p26 = scmp.eq.s32.totalorder %s25, 0
      %s28 = sadd.s32 %s27, 1
      %s29 = scalar_select %p26, %s27, %s28
      %p32 = pneg %p26
      %p33 = scmp.eq.s32.totalorder %s17, 1
      %p34 = por %p32, %p33
      %p35 = scmp.ne.s32.totalorder %s27, %s30
      %p36 = scmp.eq.s32.totalorder %s17, 0
      %p37 = por %p35, %p36
      %p38 = scmp.ne.s32.totalorder %s27, %s30
      %p39 = scmp.eq.s32.totalorder %s22, 1
      %p40 = por %p38, %p39
      %p41 = scmp.ne.s32.totalorder %s30, %s31
      %p42 = scmp.eq.s32.totalorder %s22, 0
      %p43 = por %p41, %p42
      %p44 = scmp.ne.s32.totalorder %s30, %s31
      %p45 = scmp.eq.s32.totalorder %s23, 1
      %p46 = por %p44, %p45
      %p48 = scmp.ne.s32.totalorder %s31, %s47
      %p49 = scmp.eq.s32.totalorder %s23, 0
      %p50 = por %p48, %p49
      %s52 = sadd.s32 %s51, 1
      %p55 = scmp.eq.s32.totalorder %s17, 1
      %p56 = scmp.ne.s32.totalorder %s51, %s53
      %p57 = scmp.eq.s32.totalorder %s17, 0
      %p58 = por %p56, %p57
      %p59 = scmp.ne.s32.totalorder %s51, %s53
      %p60 = scmp.eq.s32.totalorder %s22, 1
      %p61 = por %p59, %p60
      %p62 = scmp.ne.s32.totalorder %s53, %s54
      %p63 = scmp.eq.s32.totalorder %s22, 0
      %p64 = por %p62, %p63
      %p65 = scmp.ne.s32.totalorder %s53, %s54
      %p66 = scmp.eq.s32.totalorder %s23, 1
      %p67 = por %p65, %p66
      %p69 = scmp.ne.s32.totalorder %s54, %s68
      %p70 = scmp.eq.s32.totalorder %s23, 0
      %p71 = por %p69, %p70
      %s73 = sadd.s32 %s72, 1
      %p76 = scmp.eq.s32.totalorder %s17, 1
      %p77 = scmp.ne.s32.totalorder %s72, %s74
      %p78 = scmp.eq.s32.totalorder %s17, 0
      %p79 = por %p77, %p78
      %p80 = scmp.ne.s32.totalorder %s72, %s74
      %p81 = scmp.eq.s32.totalorder %s22, 1
      %p82 = por %p80, %p81
      %p83 = scmp.ne.s32.totalorder %s74, %s75
      %p84 = scmp.eq.s32.totalorder %s22, 0
      %p85 = por %p83, %p84
      %p86 = scmp.ne.s32.totalorder %s74, %s75
      %p87 = scmp.eq.s32.totalorder %s23, 1
      %p88 = por %p86, %p87
      %p90 = scmp.ne.s32.totalorder %s75, %s89
      %p91 = scmp.eq.s32.totalorder %s23, 0
      %p92 = por %p90, %p91
      %s94 = sadd.s32 %s93, 1
      %p97 = scmp.eq.s32.totalorder %s17, 1
      %p98 = scmp.ne.s32.totalorder %s93, %s95
      %p99 = scmp.eq.s32.totalorder %s17, 0
      %p100 = por %p98, %p99
      %p101 = scmp.ne.s32.totalorder %s93, %s95
      %p102 = scmp.eq.s32.totalorder %s22, 1
      %p103 = por %p101, %p102
      %p104 = scmp.ne.s32.totalorder %s95, %s96
      %p105 = scmp.eq.s32.totalorder %s22, 0
      %p106 = por %p104, %p105
      %p107 = scmp.ne.s32.totalorder %s95, %s96
      %p108 = scmp.eq.s32.totalorder %s23, 1
      %p109 = por %p107, %p108
      %p111 = scmp.ne.s32.totalorder %s96, %s110
      %p112 = scmp.eq.s32.totalorder %s23, 0
      %p113 = por %p111, %p112
      %s115 = sadd.s32 %s114, 1
      %p118 = scmp.eq.s32.totalorder %s17, 1
      %p119 = scmp.ne.s32.totalorder %s114, %s116
      %p120 = scmp.eq.s32.totalorder %s17, 0
      %p121 = por %p119, %p120
      %p122 = scmp.ne.s32.totalorder %s114, %s116
      %p123 = scmp.eq.s32.totalorder %s22, 1
      %p124 = por %p122, %p123
      %p125 = scmp.ne.s32.totalorder %s116, %s117
      %p126 = scmp.eq.s32.totalorder %s22, 0
      %p127 = por %p125, %p126
      %p128 = scmp.ne.s32.totalorder %s116, %s117
      %p129 = scmp.eq.s32.totalorder %s23, 1
      %p130 = por %p128, %p129
      %p132 = scmp.ne.s32.totalorder %s117, %s131
      %p133 = scmp.eq.s32.totalorder %s23, 0
      %p134 = por %p132, %p133
      %s136 = sadd.s32 %s135, 1
      %p139 = scmp.eq.s32.totalorder %s17, 1
      %p140 = scmp.ne.s32.totalorder %s135, %s137
      %p141 = scmp.eq.s32.totalorder %s17, 0
      %p142 = por %p140, %p141
      %p143 = scmp.ne.s32.totalorder %s135, %s137
      %p144 = scmp.eq.s32.totalorder %s22, 1
      %p145 = por %p143, %p144
      %p146 = scmp.ne.s32.totalorder %s137, %s138
      %p147 = scmp.eq.s32.totalorder %s22, 0
      %p148 = por %p146, %p147
      %p149 = scmp.ne.s32.totalorder %s137, %s138
      %p150 = scmp.eq.s32.totalorder %s23, 1
      %p151 = por %p149, %p150
      %p153 = scmp.ne.s32.totalorder %s138, %s152
      %p154 = scmp.eq.s32.totalorder %s23, 0
      %p155 = por %p153, %p154
      %s157 = sadd.s32 %s156, 1
      %p160 = scmp.eq.s32.totalorder %s17, 1
      %p161 = scmp.ne.s32.totalorder %s156, %s158
      %p162 = scmp.eq.s32.totalorder %s17, 0
      %p163 = por %p161, %p162
      %p164 = scmp.ne.s32.totalorder %s156, %s158
      %p165 = scmp.eq.s32.totalorder %s22, 1
      %p166 = por %p164, %p165
      %p167 = scmp.ne.s32.totalorder %s158, %s159
      %p168 = scmp.eq.s32.totalorder %s22, 0
      %p169 = por %p167, %p168
      %p170 = scmp.ne.s32.totalorder %s158, %s159
      %p171 = scmp.eq.s32.totalorder %s23, 1
      %p172 = por %p170, %p171
      %p174 = scmp.ne.s32.totalorder %s159, %s173
      %p175 = scmp.eq.s32.totalorder %s23, 0
      %p176 = por %p174, %p175
      %s178 = sadd.s32 %s177, 1
      %p181 = scmp.eq.s32.totalorder %s17, 1
      %p182 = scmp.ne.s32.totalorder %s177, %s179
      %p183 = scmp.eq.s32.totalorder %s17, 0
      %p184 = por %p182, %p183
      %p185 = scmp.ne.s32.totalorder %s177, %s179
      %p186 = scmp.eq.s32.totalorder %s22, 1
      %p187 = por %p185, %p186
      %p188 = scmp.ne.s32.totalorder %s179, %s180
      %p189 = scmp.eq.s32.totalorder %s22, 0
      %p190 = por %p188, %p189
      %p191 = scmp.ne.s32.totalorder %s179, %s180
      %p192 = scmp.eq.s32.totalorder %s23, 1
      %p193 = por %p191, %p192
      %p195 = scmp.ne.s32.totalorder %s180, %s194
      %p196 = scmp.eq.s32.totalorder %s23, 0
      %p197 = por %p195, %p196
      %s199 = sadd.s32 %s198, 1
      %p202 = scmp.eq.s32.totalorder %s17, 1
      %p203 = scmp.ne.s32.totalorder %s198, %s200
      %p204 = scmp.eq.s32.totalorder %s17, 0
      %p205 = por %p203, %p204
      %p206 = scmp.ne.s32.totalorder %s198, %s200
      %p207 = scmp.eq.s32.totalorder %s22, 1
      %p208 = por %p206, %p207
      %p209 = scmp.ne.s32.totalorder %s200, %s201
      %p210 = scmp.eq.s32.totalorder %s22, 0
      %p211 = por %p209, %p210
      %p212 = scmp.ne.s32.totalorder %s200, %s201
      %p213 = scmp.eq.s32.totalorder %s23, 1
      %p214 = por %p212, %p213
      %p216 = scmp.ne.s32.totalorder %s201, %s215
      %p217 = scmp.eq.s32.totalorder %s23, 0
      %p218 = por %p216, %p217
      %s219 = ssub.s32 %s17, %s24
      %p220 = scmp.eq.s32.totalorder %s219, 0
      %s222 = sadd.s32 %s221, 1
      %s223 = scalar_select %p220, %s221, %s222
      %p226 = pneg %p220
      %p227 = scmp.eq.s32.totalorder %s17, 1
      %p228 = por %p226, %p227
      %p229 = scmp.ne.s32.totalorder %s221, %s224
      %p230 = scmp.eq.s32.totalorder %s17, 0
      %p231 = por %p229, %p230
      %p232 = scmp.ne.s32.totalorder %s221, %s224
      %p233 = scmp.eq.s32.totalorder %s22, 1
      %p234 = por %p232, %p233
      %p235 = scmp.ne.s32.totalorder %s224, %s225
      %p236 = scmp.eq.s32.totalorder %s22, 0
      %p237 = por %p235, %p236
      %p238 = scmp.ne.s32.totalorder %s224, %s225
      %p239 = scmp.eq.s32.totalorder %s23, 1
      %p240 = por %p238, %p239
      %p242 = scmp.ne.s32.totalorder %s225, %s241
      %p243 = scmp.eq.s32.totalorder %s23, 0
      %p244 = por %p242, %p243
      %p245 = scmp.le.s32.totalorder 1, %s17
      %p246 = scmp.lt.s32.totalorder %s17, 3
      %p247 = pnand %p245, %p246
      %p248 = pneg %p247
      // Predicated region
      $region9: #{tpu_custom_call.1} parent=5 // pred_check
        _
      $region10: #{tpu_custom_call.1} parent=5 // pred_check_branch
        %250 = sbr.rel (%p247) target = $region12
      $region11: #{tpu_custom_call.1} parent=5 // pred_region
        %s251 = ssub.s32 %s17, 1
        // Predicated region
        $region13: #{tpu_custom_call.1} parent=11 // pred_check
          %p252 = pneg %p64
        $region14: #{tpu_custom_call.1} parent=11 // pred_check_branch
          %254 = sbr.rel (%p252) target = $region16
        $region15: #{tpu_custom_call.1} parent=11 // pred_region
          _
        $region16: #{tpu_custom_call.1} parent=11 // pred_fallthru
          _
        // Predicated region
        $region17: #{tpu_custom_call.1} parent=11 // pred_check
          %p255 = pneg %p85
        $region18: #{tpu_custom_call.1} parent=11 // pred_check_branch
          %257 = sbr.rel (%p255) target = $region20
        $region19: #{tpu_custom_call.1} parent=11 // pred_region
          _
        $region20: #{tpu_custom_call.1} parent=11 // pred_fallthru
          _
        // Predicated region
        $region21: #{tpu_custom_call.1} parent=11 // pred_check
          %p258 = pneg %p106
        $region22: #{tpu_custom_call.1} parent=11 // pred_check_branch
          %260 = sbr.rel (%p258) target = $region24
        $region23: #{tpu_custom_call.1} parent=11 // pred_region
          %s262 = ssub.s32 8192, 8192
          %263 = vsyncadd [#allocation3], %s262
          %s264 = sshll.u32 [#allocation2], 4
          %s265 = int_to_ptr.vmem [resolvable:$true] %s264
          %270 = dma.hbm_to_vmem [thread:$0]  %s3, 8192, %s265, [#allocation3], 256, 256, 16
        $region24: #{tpu_custom_call.1} parent=11 // pred_fallthru
          _
        // Predicated region
        $region25: #{tpu_custom_call.1} parent=11 // pred_check
          %p271 = pneg %p127
        $region26: #{tpu_custom_call.1} parent=11 // pred_check_branch
          %273 = sbr.rel (%p271) target = $region28
        $region27: #{tpu_custom_call.1} parent=11 // pred_region
          _
        $region28: #{tpu_custom_call.1} parent=11 // pred_fallthru
          _
        // Predicated region
        $region29: #{tpu_custom_call.1} parent=11 // pred_check
          %p274 = pneg %p148
        $region30: #{tpu_custom_call.1} parent=11 // pred_check_branch
          %276 = sbr.rel (%p274) target = $region32
        $region31: #{tpu_custom_call.1} parent=11 // pred_region
          %s278 = ssub.s32 8192, 8192
          %279 = vsyncadd [#allocation5], %s278
          %s280 = sshll.u32 [#allocation4], 4
          %s281 = int_to_ptr.vmem [resolvable:$true] %s280
          %286 = dma.hbm_to_vmem [thread:$0]  %s5, 8192, %s281, [#allocation5], 256, 256, 16
        $region32: #{tpu_custom_call.1} parent=11 // pred_fallthru
          _
        // Predicated region
        $region33: #{tpu_custom_call.1} parent=11 // pred_check
          %p287 = pneg %p169
        $region34: #{tpu_custom_call.1} parent=11 // pred_check_branch
          %289 = sbr.rel (%p287) target = $region36
        $region35: #{tpu_custom_call.1} parent=11 // pred_region
          _
        $region36: #{tpu_custom_call.1} parent=11 // pred_fallthru
          _
        // Predicated region
        $region37: #{tpu_custom_call.1} parent=11 // pred_check
          %p290 = pneg %p190
        $region38: #{tpu_custom_call.1} parent=11 // pred_check_branch
          %292 = sbr.rel (%p290) target = $region40
        $region39: #{tpu_custom_call.1} parent=11 // pred_region
          _
        $region40: #{tpu_custom_call.1} parent=11 // pred_fallthru
          _
        // Predicated region
        $region41: #{tpu_custom_call.1} parent=11 // pred_check
          %p293 = pneg %p211
        $region42: #{tpu_custom_call.1} parent=11 // pred_check_branch
          %295 = sbr.rel (%p293) target = $region44
        $region43: #{tpu_custom_call.1} parent=11 // pred_region
          _
        $region44: #{tpu_custom_call.1} parent=11 // pred_fallthru
          _
      $region12: #{tpu_custom_call.1} parent=5 // pred_fallthru
        _
      %p296 = scmp.lt.s32.totalorder %s17, 2
      // Predicated region
      $region45: #{tpu_custom_call.1} parent=5 // pred_check
        %p297 = pneg %p296
      $region46: #{tpu_custom_call.1} parent=5 // pred_check_branch
        %299 = sbr.rel (%p297) target = $region48
      $region47: #{tpu_custom_call.1} parent=5 // pred_region
        // Predicated region
        $region49: #{tpu_custom_call.1} parent=47 // pred_check
          %p300 = pneg %p37
        $region50: #{tpu_custom_call.1} parent=47 // pred_check_branch
          %302 = sbr.rel (%p300) target = $region52
        $region51: #{tpu_custom_call.1} parent=47 // pred_region
          %s303 = smul.u32 4, %s17
          %p304 = scmp.lt.s32.totalorder %s303, 7
          %s305 = scalar_select %p304, %s303, 7
          %s306 = smul.addr %s305, 8
          %s307 = scalar_lea.vmem %s0, %s306
          %s308 = smul.u32 4, %s17
        $region52: #{tpu_custom_call.1} parent=47 // pred_fallthru
          _
      $region48: #{tpu_custom_call.1} parent=5 // pred_fallthru
        _
      %p309 = scmp.le.s32.totalorder 1, %s17
      %p310 = scmp.lt.s32.totalorder %s17, 3
      %p311 = pnand %p309, %p310
      %p312 = pneg %p311
      // Predicated region
      $region53: #{tpu_custom_call.1} parent=5 // pred_check
        _
      $region54: #{tpu_custom_call.1} parent=5 // pred_check_branch
        %314 = sbr.rel (%p311) target = $region56
      $region55: #{tpu_custom_call.1} parent=5 // pred_region
        %s315 = ssub.s32 %s17, 1
        // Predicated region
        $region57: #{tpu_custom_call.1} parent=55 // pred_check
          %p316 = pneg %p106
        $region58: #{tpu_custom_call.1} parent=55 // pred_check_branch
          %318 = sbr.rel (%p316) target = $region60
        $region59: #{tpu_custom_call.1} parent=55 // pred_region
          %319 = dma.done [#allocation3], 8192
        $region60: #{tpu_custom_call.1} parent=55 // pred_fallthru
          _
        // Predicated region
        $region61: #{tpu_custom_call.1} parent=55 // pred_check
          %p320 = pneg %p148
        $region62: #{tpu_custom_call.1} parent=55 // pred_check_branch
          %322 = sbr.rel (%p320) target = $region64
        $region63: #{tpu_custom_call.1} parent=55 // pred_region
          %323 = dma.done [#allocation5], 8192
        $region64: #{tpu_custom_call.1} parent=55 // pred_fallthru
          _
        %s324 = smul.u32 4, %s22
        %p325 = scmp.lt.s32.totalorder %s324, 7
        %s326 = scalar_select %p325, %s324, 7
        %s327 = smul.addr %s326, 8
        %s328 = scalar_lea.vmem %s0, %s327
        %p329 = pneg %p43
        %p330 = pneg %p40
        %p331 = pneg %p64
        %p332 = pneg %p61
        %p333 = pneg %p85
        %p334 = pneg %p82
        %p335 = pneg %p106
        %p336 = pneg %p103
        %p337 = pneg %p127
        %p338 = pneg %p124
        %p339 = pneg %p148
        %p340 = pneg %p145
        %p341 = pneg %p169
        %p342 = pneg %p166
        %p343 = pneg %p190
        %p344 = pneg %p187
        %p345 = pneg %p211
        %p346 = pneg %p208
        %p347 = pneg %p237
        %p348 = pneg %p234
        %s349 = smul.u32 4, %s22
        %p350 = scmp.lt.s32.totalorder %s349, 7
        %s351 = scalar_select %p350, %s349, 7
        %s352 = smul.addr %s351, 8
        %s353 = scalar_lea.vmem %s9, %s352
        %s354 = smul.u32 4, %s22
        %p355 = scmp.lt.s32.totalorder %s354, 7
        %s356 = scalar_select %p355, %s354, 7
        %s357 = smul.addr %s356, 8
        %s358 = scalar_lea.vmem %s0, %s357
        %s359 = smul.u32 4, %s22
        %s360 = smul.u32 4, %s22
        %p361 = scmp.lt.s32.totalorder %s360, 7
        %s362 = scalar_select %p361, %s360, 7
        %s363 = smul.addr %s362, 8
        %s364 = scalar_lea.vmem %s9, %s363
        %s365 = smul.u32 4, %s22
        %v366 = vld [vmem:[%s358] sm:$0xff]
        %v367 = vld [vmem:[%s358 + $0x8] sm:$0xff]
        %v368 = vld [vmem:[%s358 + $0x10] sm:$0xff]
        %v369 = vld [vmem:[%s358 + $0x18] sm:$0xff]
        %v370 = vld [vmem:[%s1] sm:$0xff]
        %v371 = vld [vmem:[%s1 + $0x8] sm:$0xff]
        %v372 = vld [vmem:[%s1 + $0x10] sm:$0xff]
        %v373 = vld [vmem:[%s1 + $0x18] sm:$0xff]
        %v374 = vld [vmem:[%s1 + $0x20] sm:$0xff]
        %v375 = vld [vmem:[%s1 + $0x28] sm:$0xff]
        %v376 = vld [vmem:[%s1 + $0x30] sm:$0xff]
        %v377 = vld [vmem:[%s1 + $0x38] sm:$0xff]
        %v378 = vld [vmem:[%s2] sm:$0x3]
        %v380 = vlaneseq
        %v381 = vshrl.u32 %v380, 7
        %v382 = vsub.s32 0, %v381
        %v383 = vrot.slane %v378, %v382
        %v384 = vlaneseq
        %v385 = vshrl.u32 %v384, 7
        %v386 = vsub.s32 1, %v385
        %v387 = vrot.slane %v378, %v386
        %vm390 = vcmask 261120
        %v392 = vsel %vm390, %v366, 0
        %v395 = vsel %vm390, %v367, 0
        %v398 = vsel %vm390, %v368, 0
        %v401 = vsel %vm390, %v369, 0
        %403 = vmatprep.subr.mxu0 %v371
        %404 = vmatpush1.msra.mxu0 %v370
        %405 = vmatprep.subr.mxu0 %v373
        %406 = vmatpush1.msra.mxu0 %v372
        %407 = vmatprep.subr.mxu0 %v375
        %408 = vmatpush1.msra.mxu0 %v374
        %409 = vmatprep.subr.mxu0 %v377
        %410 = vmatpush1.msra.mxu0 %v376
        %411 = vmatprep.subr.mxu0 0.0
        %412 = vmatpush1.msra.mxu0 0.0
        %413 = vmatprep.subr.mxu0 0.0
        %414 = vmatpush1.msra.mxu0 0.0
        %415 = vmatprep.subr.mxu0 0.0
        %416 = vmatpush1.msra.mxu0 0.0
        %417 = vmatprep.subr.mxu0 0.0
        %418 = vmatpush1.msra.mxu0 0.0
        %419 = vmatprep.subr.mxu0 0.0
        %420 = vmatpush1.msra.mxu0 0.0
        %421 = vmatprep.subr.mxu0 0.0
        %422 = vmatpush1.msra.mxu0 0.0
        %423 = vmatprep.subr.mxu0 0.0
        %424 = vmatpush1.msra.mxu0 0.0
        %425 = vmatprep.subr.mxu0 0.0
        %426 = vmatpush1.msra.mxu0 0.0
        %427 = vmatprep.subr.mxu0 0.0
        %428 = vmatpush1.msra.mxu0 0.0
        %429 = vmatprep.subr.mxu0 0.0
        %430 = vmatpush1.msra.mxu0 0.0
        %431 = vmatprep.subr.mxu0 0.0
        %432 = vmatpush1.msra.mxu0 0.0
        %433 = vmatprep.subr.mxu0 0.0
        %434 = vmatpush1.msra.mxu0 0.0
        %435 = vmatprep.subr.mxu0 0.0
        %436 = vmatpush1.msra.mxu0 0.0
        %437 = vmatprep.subr.mxu0 0.0
        %438 = vmatpush1.msra.mxu0 0.0
        %439 = vmatprep.subr.mxu0 0.0
        %440 = vmatpush1.msra.mxu0 0.0
        %441 = vmatprep.subr.mxu0 0.0
        %442 = vmatpush1.msra.mxu0 0.0
        %443 = vmatprep.subr.mxu0 0.0
        %444 = vmatpush1.msra.mxu0 0.0
        %445 = vmatprep.subr.mxu0 0.0
        %446 = vmatpush1.msra.mxu0 0.0
        %447 = vmatprep.subr.mxu0 0.0
        %448 = vmatpush1.msra.mxu0 0.0
        %449 = vmatprep.subr.mxu0 0.0
        %450 = vmatpush1.msra.mxu0 0.0
        %451 = vmatprep.subr.mxu0 0.0
        %452 = vmatpush1.msra.mxu0 0.0
        %453 = vmatprep.subr.mxu0 0.0
        %454 = vmatpush1.msra.mxu0 0.0
        %455 = vmatprep.subr.mxu0 0.0
        %456 = vmatpush1.msra.mxu0 0.0
        %457 = vmatprep.subr.mxu0 0.0
        %458 = vmatpush1.msra.mxu0 0.0
        %459 = vmatprep.subr.mxu0 0.0
        %460 = vmatpush1.msra.mxu0 0.0
        %461 = vmatprep.subr.mxu0 0.0
        %462 = vmatpush1.msra.mxu0 0.0
        %463 = vmatprep.subr.mxu0 0.0
        %464 = vmatpush1.msra.mxu0 0.0
        %465 = vmatprep.subr.mxu0 0.0
        %466 = vmatpush1.msra.mxu0 0.0
        %467 = vmatprep.mubr.f32.mxu0 0.0
        %468 = vmatmul.mubr.f32.gmra.mrb[0].mxu0 %v392
        %v469 = vpop.f32.mrb[0].mxu0
        %v470 = vadd.f32 %v383, %v469
        %v471 = vpop.f32.mrb[0].mxu0
        %v472 = vadd.f32 %v387, %v471
        %473 = vmatprep.mubr.f32.mxu0 0.0
        %474 = vmatmul.mubr.f32.gmra.mrb[0].mxu0 %v395
        %v475 = vpop.f32.mrb[0].mxu0
        %v476 = vadd.f32 %v383, %v475
        %v477 = vpop.f32.mrb[0].mxu0
        %v478 = vadd.f32 %v387, %v477
        %479 = vmatprep.mubr.f32.mxu0 0.0
        %480 = vmatmul.mubr.f32.gmra.mrb[0].mxu0 %v398
        %v481 = vpop.f32.mrb[0].mxu0
        %v482 = vadd.f32 %v383, %v481
        %v483 = vpop.f32.mrb[0].mxu0
        %v484 = vadd.f32 %v387, %v483
        %485 = vmatprep.mubr.f32.mxu0 0.0
        %486 = vmatmul.mubr.f32.gmra.mrb[0].mxu0 %v401
        %v487 = vpop.f32.mrb[0].mxu0
        %v488 = vadd.f32 %v383, %v487
        %v489 = vpop.f32.mrb[0].mxu0
        %v490 = vadd.f32 %v387, %v489
        %491 = vdwg.mxu0
        %vm492 = vcmp.gt.f32.partialorder %v470, 0.0
        %vm493 = vcmp.gt.f32.partialorder %v472, 0.0
        %vm494 = vcmp.gt.f32.partialorder %v476, 0.0
        %vm495 = vcmp.gt.f32.partialorder %v478, 0.0
        %vm496 = vcmp.gt.f32.partialorder %v482, 0.0
        %vm497 = vcmp.gt.f32.partialorder %v484, 0.0
        %vm498 = vcmp.gt.f32.partialorder %v488, 0.0
        %vm499 = vcmp.gt.f32.partialorder %v490, 0.0
        %v500 = vmul.f32 %v470, 0.01
        %v501 = vmul.f32 %v472, 0.01
        %v502 = vmul.f32 %v476, 0.01
        %v503 = vmul.f32 %v478, 0.01
        %v504 = vmul.f32 %v482, 0.01
        %v505 = vmul.f32 %v484, 0.01
        %v506 = vmul.f32 %v488, 0.01
        %v507 = vmul.f32 %v490, 0.01
        %v508 = vsel %vm492, %v470, %v500
        %v509 = vsel %vm493, %v472, %v501
        %v510 = vsel %vm494, %v476, %v502
        %v511 = vsel %vm495, %v478, %v503
        %v512 = vsel %vm496, %v482, %v504
        %v513 = vsel %vm497, %v484, %v505
        %v514 = vsel %vm498, %v488, %v506
        %v515 = vsel %vm499, %v490, %v507
        %v516 = vld [vmem:[#allocation2] sm:$0xff]
        %v517 = vld [vmem:[#allocation2 + $0x8] sm:$0xff]
        %v518 = vld [vmem:[#allocation2 + $0x10] sm:$0xff]
        %v519 = vld [vmem:[#allocation2 + $0x18] sm:$0xff]
        %v520 = vld [vmem:[#allocation2 + $0x20] sm:$0xff]
        %v521 = vld [vmem:[#allocation2 + $0x28] sm:$0xff]
        %v522 = vld [vmem:[#allocation2 + $0x30] sm:$0xff]
        %v523 = vld [vmem:[#allocation2 + $0x38] sm:$0xff]
        %v524 = vld [vmem:[#allocation2 + $0x40] sm:$0xff]
        %v525 = vld [vmem:[#allocation2 + $0x48] sm:$0xff]
        %v526 = vld [vmem:[#allocation2 + $0x50] sm:$0xff]
        %v527 = vld [vmem:[#allocation2 + $0x58] sm:$0xff]
        %v528 = vld [vmem:[#allocation2 + $0x60] sm:$0xff]
        %v529 = vld [vmem:[#allocation2 + $0x68] sm:$0xff]
        %v530 = vld [vmem:[#allocation2 + $0x70] sm:$0xff]
        %v531 = vld [vmem:[#allocation2 + $0x78] sm:$0xff]
        %v532 = vld [vmem:[#allocation2 + $0x80] sm:$0xff]
        %v533 = vld [vmem:[#allocation2 + $0x88] sm:$0xff]
        %v534 = vld [vmem:[#allocation2 + $0x90] sm:$0xff]
        %v535 = vld [vmem:[#allocation2 + $0x98] sm:$0xff]
        %v536 = vld [vmem:[#allocation2 + $0xa0] sm:$0xff]
        %v537 = vld [vmem:[#allocation2 + $0xa8] sm:$0xff]
        %v538 = vld [vmem:[#allocation2 + $0xb0] sm:$0xff]
        %v539 = vld [vmem:[#allocation2 + $0xb8] sm:$0xff]
        %v540 = vld [vmem:[#allocation2 + $0xc0] sm:$0xff]
        %v541 = vld [vmem:[#allocation2 + $0xc8] sm:$0xff]
        %v542 = vld [vmem:[#allocation2 + $0xd0] sm:$0xff]
        %v543 = vld [vmem:[#allocation2 + $0xd8] sm:$0xff]
        %v544 = vld [vmem:[#allocation2 + $0xe0] sm:$0xff]
        %v545 = vld [vmem:[#allocation2 + $0xe8] sm:$0xff]
        %v546 = vld [vmem:[#allocation2 + $0xf0] sm:$0xff]
        %v547 = vld [vmem:[#allocation2 + $0xf8] sm:$0xff]
        %v548 = vld [vmem:[#allocation2 + $0x100] sm:$0xff]
        %v549 = vld [vmem:[#allocation2 + $0x108] sm:$0xff]
        %v550 = vld [vmem:[#allocation2 + $0x110] sm:$0xff]
        %v551 = vld [vmem:[#allocation2 + $0x118] sm:$0xff]
        %v552 = vld [vmem:[#allocation2 + $0x120] sm:$0xff]
        %v553 = vld [vmem:[#allocation2 + $0x128] sm:$0xff]
        %v554 = vld [vmem:[#allocation2 + $0x130] sm:$0xff]
        %v555 = vld [vmem:[#allocation2 + $0x138] sm:$0xff]
        %v556 = vld [vmem:[#allocation2 + $0x140] sm:$0xff]
        %v557 = vld [vmem:[#allocation2 + $0x148] sm:$0xff]
        %v558 = vld [vmem:[#allocation2 + $0x150] sm:$0xff]
        %v559 = vld [vmem:[#allocation2 + $0x158] sm:$0xff]
        %v560 = vld [vmem:[#allocation2 + $0x160] sm:$0xff]
        %v561 = vld [vmem:[#allocation2 + $0x168] sm:$0xff]
        %v562 = vld [vmem:[#allocation2 + $0x170] sm:$0xff]
        %v563 = vld [vmem:[#allocation2 + $0x178] sm:$0xff]
        %v564 = vld [vmem:[#allocation2 + $0x180] sm:$0xff]
        %v565 = vld [vmem:[#allocation2 + $0x188] sm:$0xff]
        %v566 = vld [vmem:[#allocation2 + $0x190] sm:$0xff]
        %v567 = vld [vmem:[#allocation2 + $0x198] sm:$0xff]
        %v568 = vld [vmem:[#allocation2 + $0x1a0] sm:$0xff]
        %v569 = vld [vmem:[#allocation2 + $0x1a8] sm:$0xff]
        %v570 = vld [vmem:[#allocation2 + $0x1b0] sm:$0xff]
        %v571 = vld [vmem:[#allocation2 + $0x1b8] sm:$0xff]
        %v572 = vld [vmem:[#allocation2 + $0x1c0] sm:$0xff]
        %v573 = vld [vmem:[#allocation2 + $0x1c8] sm:$0xff]
        %v574 = vld [vmem:[#allocation2 + $0x1d0] sm:$0xff]
        %v575 = vld [vmem:[#allocation2 + $0x1d8] sm:$0xff]
        %v576 = vld [vmem:[#allocation2 + $0x1e0] sm:$0xff]
        %v577 = vld [vmem:[#allocation2 + $0x1e8] sm:$0xff]
        %v578 = vld [vmem:[#allocation2 + $0x1f0] sm:$0xff]
        %v579 = vld [vmem:[#allocation2 + $0x1f8] sm:$0xff]
        %v580 = vld [vmem:[%s4] sm:$0x3]
        %v582 = vlaneseq
        %v583 = vshrl.u32 %v582, 7
        %v584 = vsub.s32 0, %v583
        %v585 = vrot.slane %v580, %v584
        %v586 = vlaneseq
        %v587 = vshrl.u32 %v586, 7
        %v588 = vsub.s32 1, %v587
        %v589 = vrot.slane %v580, %v588
        %592 = vmatprep.subr.mxu0 %v517
        %593 = vmatpush1.msra.mxu0 %v516
        %594 = vmatprep.subr.mxu0 %v519
        %595 = vmatpush1.msra.mxu0 %v518
        %596 = vmatprep.subr.mxu0 %v521
        %597 = vmatpush1.msra.mxu0 %v520
        %598 = vmatprep.subr.mxu0 %v523
        %599 = vmatpush1.msra.mxu0 %v522
        %600 = vmatprep.subr.mxu0 %v525
        %601 = vmatpush1.msra.mxu0 %v524
        %602 = vmatprep.subr.mxu0 %v527
        %603 = vmatpush1.msra.mxu0 %v526
        %604 = vmatprep.subr.mxu0 %v529
        %605 = vmatpush1.msra.mxu0 %v528
        %606 = vmatprep.subr.mxu0 %v531
        %607 = vmatpush1.msra.mxu0 %v530
        %608 = vmatprep.subr.mxu0 %v533
        %609 = vmatpush1.msra.mxu0 %v532
        %610 = vmatprep.subr.mxu0 %v535
        %611 = vmatpush1.msra.mxu0 %v534
        %612 = vmatprep.subr.mxu0 %v537
        %613 = vmatpush1.msra.mxu0 %v536
        %614 = vmatprep.subr.mxu0 %v539
        %615 = vmatpush1.msra.mxu0 %v538
        %616 = vmatprep.subr.mxu0 %v541
        %617 = vmatpush1.msra.mxu0 %v540
        %618 = vmatprep.subr.mxu0 %v543
        %619 = vmatpush1.msra.mxu0 %v542
        %620 = vmatprep.subr.mxu0 %v545
        %621 = vmatpush1.msra.mxu0 %v544
        %622 = vmatprep.subr.mxu0 %v547
        %623 = vmatpush1.msra.mxu0 %v546
        %624 = vmatprep.subr.mxu0 %v549
        %625 = vmatpush1.msra.mxu0 %v548
        %626 = vmatprep.subr.mxu0 %v551
        %627 = vmatpush1.msra.mxu0 %v550
        %628 = vmatprep.subr.mxu0 %v553
        %629 = vmatpush1.msra.mxu0 %v552
        %630 = vmatprep.subr.mxu0 %v555
        %631 = vmatpush1.msra.mxu0 %v554
        %632 = vmatprep.subr.mxu0 %v557
        %633 = vmatpush1.msra.mxu0 %v556
        %634 = vmatprep.subr.mxu0 %v559
        %635 = vmatpush1.msra.mxu0 %v558
        %636 = vmatprep.subr.mxu0 %v561
        %637 = vmatpush1.msra.mxu0 %v560
        %638 = vmatprep.subr.mxu0 %v563
        %639 = vmatpush1.msra.mxu0 %v562
        %640 = vmatprep.subr.mxu0 %v565
        %641 = vmatpush1.msra.mxu0 %v564
        %642 = vmatprep.subr.mxu0 %v567
        %643 = vmatpush1.msra.mxu0 %v566
        %644 = vmatprep.subr.mxu0 %v569
        %645 = vmatpush1.msra.mxu0 %v568
        %646 = vmatprep.subr.mxu0 %v571
        %647 = vmatpush1.msra.mxu0 %v570
        %648 = vmatprep.subr.mxu0 %v573
        %649 = vmatpush1.msra.mxu0 %v572
        %650 = vmatprep.subr.mxu0 %v575
        %651 = vmatpush1.msra.mxu0 %v574
        %652 = vmatprep.subr.mxu0 %v577
        %653 = vmatpush1.msra.mxu0 %v576
        %654 = vmatprep.subr.mxu0 %v579
        %655 = vmatpush1.msra.mxu0 %v578
        %656 = vmatprep.mubr.f32.mxu0 %v509
        %657 = vmatmul.mubr.f32.gmra.mrb[0].mxu0 %v508
        %v658 = vpop.f32.mrb[0].mxu0
        %v659 = vadd.f32 %v585, %v658
        %v660 = vpop.f32.mrb[0].mxu0
        %v661 = vadd.f32 %v589, %v660
        %662 = vmatprep.mubr.f32.mxu0 %v511
        %663 = vmatmul.mubr.f32.gmra.mrb[0].mxu0 %v510
        %v664 = vpop.f32.mrb[0].mxu0
        %v665 = vadd.f32 %v585, %v664
        %v666 = vpop.f32.mrb[0].mxu0
        %v667 = vadd.f32 %v589, %v666
        %668 = vmatprep.mubr.f32.mxu0 %v513
        %669 = vmatmul.mubr.f32.gmra.mrb[0].mxu0 %v512
        %v670 = vpop.f32.mrb[0].mxu0
        %v671 = vadd.f32 %v585, %v670
        %v672 = vpop.f32.mrb[0].mxu0
        %v673 = vadd.f32 %v589, %v672
        %674 = vmatprep.mubr.f32.mxu0 %v515
        %675 = vmatmul.mubr.f32.gmra.mrb[0].mxu0 %v514
        %v676 = vpop.f32.mrb[0].mxu0
        %v677 = vadd.f32 %v585, %v676
        %v678 = vpop.f32.mrb[0].mxu0
        %v679 = vadd.f32 %v589, %v678
        %680 = vdwg.mxu0
        %v681 = vmul.f32 %v659, 0.5
        %v682 = vmul.f32 %v661, 0.5
        %v683 = vmul.f32 %v665, 0.5
        %v684 = vmul.f32 %v667, 0.5
        %v685 = vmul.f32 %v671, 0.5
        %v686 = vmul.f32 %v673, 0.5
        %v687 = vmul.f32 %v677, 0.5
        %v688 = vmul.f32 %v679, 0.5
        %v689 = vtanh.pop %v681
        %v690 = vtanh.pop %v682
        %v691 = vtanh.pop %v683
        %v692 = vtanh.pop %v684
        %v693 = vtanh.pop %v685
        %v694 = vtanh.pop %v686
        %v695 = vtanh.pop %v687
        %v696 = vtanh.pop %v688
        %v697 = vmul.f32 %v689, 0.5
        %v698 = vmul.f32 %v690, 0.5
        %v699 = vmul.f32 %v691, 0.5
        %v700 = vmul.f32 %v692, 0.5
        %v701 = vmul.f32 %v693, 0.5
        %v702 = vmul.f32 %v694, 0.5
        %v703 = vmul.f32 %v695, 0.5
        %v704 = vmul.f32 %v696, 0.5
        %v705 = vadd.f32 %v697, 0.5
        %v706 = vadd.f32 %v698, 0.5
        %v707 = vadd.f32 %v699, 0.5
        %v708 = vadd.f32 %v700, 0.5
        %v709 = vadd.f32 %v701, 0.5
        %v710 = vadd.f32 %v702, 0.5
        %v711 = vadd.f32 %v703, 0.5
        %v712 = vadd.f32 %v704, 0.5
        %v713 = vld [vmem:[#allocation4] sm:$0xff]
        %v714 = vld [vmem:[#allocation4 + $0x8] sm:$0xff]
        %v715 = vld [vmem:[#allocation4 + $0x10] sm:$0xff]
        %v716 = vld [vmem:[#allocation4 + $0x18] sm:$0xff]
        %v717 = vld [vmem:[#allocation4 + $0x20] sm:$0xff]
        %v718 = vld [vmem:[#allocation4 + $0x28] sm:$0xff]
        %v719 = vld [vmem:[#allocation4 + $0x30] sm:$0xff]
        %v720 = vld [vmem:[#allocation4 + $0x38] sm:$0xff]
        %v721 = vld [vmem:[#allocation4 + $0x40] sm:$0xff]
        %v722 = vld [vmem:[#allocation4 + $0x48] sm:$0xff]
        %v723 = vld [vmem:[#allocation4 + $0x50] sm:$0xff]
        %v724 = vld [vmem:[#allocation4 + $0x58] sm:$0xff]
        %v725 = vld [vmem:[#allocation4 + $0x60] sm:$0xff]
        %v726 = vld [vmem:[#allocation4 + $0x68] sm:$0xff]
        %v727 = vld [vmem:[#allocation4 + $0x70] sm:$0xff]
        %v728 = vld [vmem:[#allocation4 + $0x78] sm:$0xff]
        %v729 = vld [vmem:[#allocation4 + $0x80] sm:$0xff]
        %v730 = vld [vmem:[#allocation4 + $0x88] sm:$0xff]
        %v731 = vld [vmem:[#allocation4 + $0x90] sm:$0xff]
        %v732 = vld [vmem:[#allocation4 + $0x98] sm:$0xff]
        %v733 = vld [vmem:[#allocation4 + $0xa0] sm:$0xff]
        %v734 = vld [vmem:[#allocation4 + $0xa8] sm:$0xff]
        %v735 = vld [vmem:[#allocation4 + $0xb0] sm:$0xff]
        %v736 = vld [vmem:[#allocation4 + $0xb8] sm:$0xff]
        %v737 = vld [vmem:[#allocation4 + $0xc0] sm:$0xff]
        %v738 = vld [vmem:[#allocation4 + $0xc8] sm:$0xff]
        %v739 = vld [vmem:[#allocation4 + $0xd0] sm:$0xff]
        %v740 = vld [vmem:[#allocation4 + $0xd8] sm:$0xff]
        %v741 = vld [vmem:[#allocation4 + $0xe0] sm:$0xff]
        %v742 = vld [vmem:[#allocation4 + $0xe8] sm:$0xff]
        %v743 = vld [vmem:[#allocation4 + $0xf0] sm:$0xff]
        %v744 = vld [vmem:[#allocation4 + $0xf8] sm:$0xff]
        %v745 = vld [vmem:[#allocation4 + $0x100] sm:$0xff]
        %v746 = vld [vmem:[#allocation4 + $0x108] sm:$0xff]
        %v747 = vld [vmem:[#allocation4 + $0x110] sm:$0xff]
        %v748 = vld [vmem:[#allocation4 + $0x118] sm:$0xff]
        %v749 = vld [vmem:[#allocation4 + $0x120] sm:$0xff]
        %v750 = vld [vmem:[#allocation4 + $0x128] sm:$0xff]
        %v751 = vld [vmem:[#allocation4 + $0x130] sm:$0xff]
        %v752 = vld [vmem:[#allocation4 + $0x138] sm:$0xff]
        %v753 = vld [vmem:[#allocation4 + $0x140] sm:$0xff]
        %v754 = vld [vmem:[#allocation4 + $0x148] sm:$0xff]
        %v755 = vld [vmem:[#allocation4 + $0x150] sm:$0xff]
        %v756 = vld [vmem:[#allocation4 + $0x158] sm:$0xff]
        %v757 = vld [vmem:[#allocation4 + $0x160] sm:$0xff]
        %v758 = vld [vmem:[#allocation4 + $0x168] sm:$0xff]
        %v759 = vld [vmem:[#allocation4 + $0x170] sm:$0xff]
        %v760 = vld [vmem:[#allocation4 + $0x178] sm:$0xff]
        %v761 = vld [vmem:[#allocation4 + $0x180] sm:$0xff]
        %v762 = vld [vmem:[#allocation4 + $0x188] sm:$0xff]
        %v763 = vld [vmem:[#allocation4 + $0x190] sm:$0xff]
        %v764 = vld [vmem:[#allocation4 + $0x198] sm:$0xff]
        %v765 = vld [vmem:[#allocation4 + $0x1a0] sm:$0xff]
        %v766 = vld [vmem:[#allocation4 + $0x1a8] sm:$0xff]
        %v767 = vld [vmem:[#allocation4 + $0x1b0] sm:$0xff]
        %v768 = vld [vmem:[#allocation4 + $0x1b8] sm:$0xff]
        %v769 = vld [vmem:[#allocation4 + $0x1c0] sm:$0xff]
        %v770 = vld [vmem:[#allocation4 + $0x1c8] sm:$0xff]
        %v771 = vld [vmem:[#allocation4 + $0x1d0] sm:$0xff]
        %v772 = vld [vmem:[#allocation4 + $0x1d8] sm:$0xff]
        %v773 = vld [vmem:[#allocation4 + $0x1e0] sm:$0xff]
        %v774 = vld [vmem:[#allocation4 + $0x1e8] sm:$0xff]
        %v775 = vld [vmem:[#allocation4 + $0x1f0] sm:$0xff]
        %v776 = vld [vmem:[#allocation4 + $0x1f8] sm:$0xff]
        %v777 = vld [vmem:[%s6] sm:$0x3]
        %v779 = vlaneseq
        %v780 = vshrl.u32 %v779, 7
        %v781 = vsub.s32 0, %v780
        %v782 = vrot.slane %v777, %v781
        %v783 = vlaneseq
        %v784 = vshrl.u32 %v783, 7
        %v785 = vsub.s32 1, %v784
        %v786 = vrot.slane %v777, %v785
        %789 = vmatprep.subr.mxu0 %v714
        %790 = vmatpush1.msra.mxu0 %v713
        %791 = vmatprep.subr.mxu0 %v716
        %792 = vmatpush1.msra.mxu0 %v715
        %793 = vmatprep.subr.mxu0 %v718
        %794 = vmatpush1.msra.mxu0 %v717
        %795 = vmatprep.subr.mxu0 %v720
        %796 = vmatpush1.msra.mxu0 %v719
        %797 = vmatprep.subr.mxu0 %v722
        %798 = vmatpush1.msra.mxu0 %v721
        %799 = vmatprep.subr.mxu0 %v724
        %800 = vmatpush1.msra.mxu0 %v723
        %801 = vmatprep.subr.mxu0 %v726
        %802 = vmatpush1.msra.mxu0 %v725
        %803 = vmatprep.subr.mxu0 %v728
        %804 = vmatpush1.msra.mxu0 %v727
        %805 = vmatprep.subr.mxu0 %v730
        %806 = vmatpush1.msra.mxu0 %v729
        %807 = vmatprep.subr.mxu0 %v732
        %808 = vmatpush1.msra.mxu0 %v731
        %809 = vmatprep.subr.mxu0 %v734
        %810 = vmatpush1.msra.mxu0 %v733
        %811 = vmatprep.subr.mxu0 %v736
        %812 = vmatpush1.msra.mxu0 %v735
        %813 = vmatprep.subr.mxu0 %v738
        %814 = vmatpush1.msra.mxu0 %v737
        %815 = vmatprep.subr.mxu0 %v740
        %816 = vmatpush1.msra.mxu0 %v739
        %817 = vmatprep.subr.mxu0 %v742
        %818 = vmatpush1.msra.mxu0 %v741
        %819 = vmatprep.subr.mxu0 %v744
        %820 = vmatpush1.msra.mxu0 %v743
        %821 = vmatprep.subr.mxu0 %v746
        %822 = vmatpush1.msra.mxu0 %v745
        %823 = vmatprep.subr.mxu0 %v748
        %824 = vmatpush1.msra.mxu0 %v747
        %825 = vmatprep.subr.mxu0 %v750
        %826 = vmatpush1.msra.mxu0 %v749
        %827 = vmatprep.subr.mxu0 %v752
        %828 = vmatpush1.msra.mxu0 %v751
        %829 = vmatprep.subr.mxu0 %v754
        %830 = vmatpush1.msra.mxu0 %v753
        %831 = vmatprep.subr.mxu0 %v756
        %832 = vmatpush1.msra.mxu0 %v755
        %833 = vmatprep.subr.mxu0 %v758
        %834 = vmatpush1.msra.mxu0 %v757
        %835 = vmatprep.subr.mxu0 %v760
        %836 = vmatpush1.msra.mxu0 %v759
        %837 = vmatprep.subr.mxu0 %v762
        %838 = vmatpush1.msra.mxu0 %v761
        %839 = vmatprep.subr.mxu0 %v764
        %840 = vmatpush1.msra.mxu0 %v763
        %841 = vmatprep.subr.mxu0 %v766
        %842 = vmatpush1.msra.mxu0 %v765
        %843 = vmatprep.subr.mxu0 %v768
        %844 = vmatpush1.msra.mxu0 %v767
        %845 = vmatprep.subr.mxu0 %v770
        %846 = vmatpush1.msra.mxu0 %v769
        %847 = vmatprep.subr.mxu0 %v772
        %848 = vmatpush1.msra.mxu0 %v771
        %849 = vmatprep.subr.mxu0 %v774
        %850 = vmatpush1.msra.mxu0 %v773
        %851 = vmatprep.subr.mxu0 %v776
        %852 = vmatpush1.msra.mxu0 %v775
        %853 = vmatprep.mubr.f32.mxu0 %v706
        %854 = vmatmul.mubr.f32.gmra.mrb[0].mxu0 %v705
        %v855 = vpop.f32.mrb[0].mxu0
        %v856 = vadd.f32 %v782, %v855
        %v857 = vpop.f32.mrb[0].mxu0
        %v858 = vadd.f32 %v786, %v857
        %859 = vmatprep.mubr.f32.mxu0 %v708
        %860 = vmatmul.mubr.f32.gmra.mrb[0].mxu0 %v707
        %v861 = vpop.f32.mrb[0].mxu0
        %v862 = vadd.f32 %v782, %v861
        %v863 = vpop.f32.mrb[0].mxu0
        %v864 = vadd.f32 %v786, %v863
        %865 = vmatprep.mubr.f32.mxu0 %v710
        %866 = vmatmul.mubr.f32.gmra.mrb[0].mxu0 %v709
        %v867 = vpop.f32.mrb[0].mxu0
        %v868 = vadd.f32 %v782, %v867
        %v869 = vpop.f32.mrb[0].mxu0
        %v870 = vadd.f32 %v786, %v869
        %871 = vmatprep.mubr.f32.mxu0 %v712
        %872 = vmatmul.mubr.f32.gmra.mrb[0].mxu0 %v711
        %v873 = vpop.f32.mrb[0].mxu0
        %v874 = vadd.f32 %v782, %v873
        %v875 = vpop.f32.mrb[0].mxu0
        %v876 = vadd.f32 %v786, %v875
        %877 = vdwg.mxu0
        %vm878 = vcmp.gt.f32.partialorder %v856, 0.0
        %vm879 = vcmp.gt.f32.partialorder %v858, 0.0
        %vm880 = vcmp.gt.f32.partialorder %v862, 0.0
        %vm881 = vcmp.gt.f32.partialorder %v864, 0.0
        %vm882 = vcmp.gt.f32.partialorder %v868, 0.0
        %vm883 = vcmp.gt.f32.partialorder %v870, 0.0
        %vm884 = vcmp.gt.f32.partialorder %v874, 0.0
        %vm885 = vcmp.gt.f32.partialorder %v876, 0.0
        %v886 = vmul.f32 %v856, 0.01
        %v887 = vmul.f32 %v858, 0.01
        %v888 = vmul.f32 %v862, 0.01
        %v889 = vmul.f32 %v864, 0.01
        %v890 = vmul.f32 %v868, 0.01
        %v891 = vmul.f32 %v870, 0.01
        %v892 = vmul.f32 %v874, 0.01
        %v893 = vmul.f32 %v876, 0.01
        %v894 = vsel %vm878, %v856, %v886
        %v895 = vsel %vm879, %v858, %v887
        %v896 = vsel %vm880, %v862, %v888
        %v897 = vsel %vm881, %v864, %v889
        %v898 = vsel %vm882, %v868, %v890
        %v899 = vsel %vm883, %v870, %v891
        %v900 = vsel %vm884, %v874, %v892
        %v901 = vsel %vm885, %v876, %v893
        %v902 = vld [vmem:[%s7] sm:$0xff]
        %v903 = vld [vmem:[%s7 + $0x8] sm:$0xff]
        %v904 = vld [vmem:[%s7 + $0x10] sm:$0xff]
        %v905 = vld [vmem:[%s7 + $0x18] sm:$0xff]
        %v906 = vld [vmem:[%s7 + $0x20] sm:$0xff]
        %v907 = vld [vmem:[%s7 + $0x28] sm:$0xff]
        %v908 = vld [vmem:[%s7 + $0x30] sm:$0xff]
        %v909 = vld [vmem:[%s7 + $0x38] sm:$0xff]
        %v910 = vld [vmem:[%s7 + $0x40] sm:$0xff]
        %v911 = vld [vmem:[%s7 + $0x48] sm:$0xff]
        %v912 = vld [vmem:[%s7 + $0x50] sm:$0xff]
        %v913 = vld [vmem:[%s7 + $0x58] sm:$0xff]
        %v914 = vld [vmem:[%s7 + $0x60] sm:$0xff]
        %v915 = vld [vmem:[%s7 + $0x68] sm:$0xff]
        %v916 = vld [vmem:[%s7 + $0x70] sm:$0xff]
        %v917 = vld [vmem:[%s7 + $0x78] sm:$0xff]
        %v918 = vld [vmem:[%s7 + $0x80] sm:$0xff]
        %v919 = vld [vmem:[%s7 + $0x88] sm:$0xff]
        %v920 = vld [vmem:[%s7 + $0x90] sm:$0xff]
        %v921 = vld [vmem:[%s7 + $0x98] sm:$0xff]
        %v922 = vld [vmem:[%s7 + $0xa0] sm:$0xff]
        %v923 = vld [vmem:[%s7 + $0xa8] sm:$0xff]
        %v924 = vld [vmem:[%s7 + $0xb0] sm:$0xff]
        %v925 = vld [vmem:[%s7 + $0xb8] sm:$0xff]
        %v926 = vld [vmem:[%s7 + $0xc0] sm:$0xff]
        %v927 = vld [vmem:[%s7 + $0xc8] sm:$0xff]
        %v928 = vld [vmem:[%s7 + $0xd0] sm:$0xff]
        %v929 = vld [vmem:[%s7 + $0xd8] sm:$0xff]
        %v930 = vld [vmem:[%s7 + $0xe0] sm:$0xff]
        %v931 = vld [vmem:[%s7 + $0xe8] sm:$0xff]
        %v932 = vld [vmem:[%s7 + $0xf0] sm:$0xff]
        %v933 = vld [vmem:[%s7 + $0xf8] sm:$0xff]
        %v934 = vld [vmem:[%s8] sm:$0x1]
        %v936 = vlaneseq
        %v937 = vshrl.u32 %v936, 7
        %v938 = vsub.s32 0, %v937
        %v939 = vrot.slane %v934, %v938
        %941 = vmatprep.subr.mxu0 0.0
        %942 = vmatpush1.msra.mxu0 %v902
        %943 = vmatprep.subr.mxu0 0.0
        %944 = vmatpush1.msra.mxu0 %v903
        %945 = vmatprep.subr.mxu0 0.0
        %946 = vmatpush1.msra.mxu0 %v904
        %947 = vmatprep.subr.mxu0 0.0
        %948 = vmatpush1.msra.mxu0 %v905
        %949 = vmatprep.subr.mxu0 0.0
        %950 = vmatpush1.msra.mxu0 %v906
        %951 = vmatprep.subr.mxu0 0.0
        %952 = vmatpush1.msra.mxu0 %v907
        %953 = vmatprep.subr.mxu0 0.0
        %954 = vmatpush1.msra.mxu0 %v908
        %955 = vmatprep.subr.mxu0 0.0
        %956 = vmatpush1.msra.mxu0 %v909
        %957 = vmatprep.subr.mxu0 0.0
        %958 = vmatpush1.msra.mxu0 %v910
        %959 = vmatprep.subr.mxu0 0.0
        %960 = vmatpush1.msra.mxu0 %v911
        %961 = vmatprep.subr.mxu0 0.0
        %962 = vmatpush1.msra.mxu0 %v912
        %963 = vmatprep.subr.mxu0 0.0
        %964 = vmatpush1.msra.mxu0 %v913
        %965 = vmatprep.subr.mxu0 0.0
        %966 = vmatpush1.msra.mxu0 %v914
        %967 = vmatprep.subr.mxu0 0.0
        %968 = vmatpush1.msra.mxu0 %v915
        %969 = vmatprep.subr.mxu0 0.0
        %970 = vmatpush1.msra.mxu0 %v916
        %971 = vmatprep.subr.mxu0 0.0
        %972 = vmatpush1.msra.mxu0 %v917
        %973 = vmatprep.subr.mxu0 0.0
        %974 = vmatpush1.msra.mxu0 %v918
        %975 = vmatprep.subr.mxu0 0.0
        %976 = vmatpush1.msra.mxu0 %v919
        %977 = vmatprep.subr.mxu0 0.0
        %978 = vmatpush1.msra.mxu0 %v920
        %979 = vmatprep.subr.mxu0 0.0
        %980 = vmatpush1.msra.mxu0 %v921
        %981 = vmatprep.subr.mxu0 0.0
        %982 = vmatpush1.msra.mxu0 %v922
        %983 = vmatprep.subr.mxu0 0.0
        %984 = vmatpush1.msra.mxu0 %v923
        %985 = vmatprep.subr.mxu0 0.0
        %986 = vmatpush1.msra.mxu0 %v924
        %987 = vmatprep.subr.mxu0 0.0
        %988 = vmatpush1.msra.mxu0 %v925
        %989 = vmatprep.subr.mxu0 0.0
        %990 = vmatpush1.msra.mxu0 %v926
        %991 = vmatprep.subr.mxu0 0.0
        %992 = vmatpush1.msra.mxu0 %v927
        %993 = vmatprep.subr.mxu0 0.0
        %994 = vmatpush1.msra.mxu0 %v928
        %995 = vmatprep.subr.mxu0 0.0
        %996 = vmatpush1.msra.mxu0 %v929
        %997 = vmatprep.subr.mxu0 0.0
        %998 = vmatpush1.msra.mxu0 %v930
        %999 = vmatprep.subr.mxu0 0.0
        %1000 = vmatpush1.msra.mxu0 %v931
        %1001 = vmatprep.subr.mxu0 0.0
        %1002 = vmatpush1.msra.mxu0 %v932
        %1003 = vmatprep.subr.mxu0 0.0
        %1004 = vmatpush1.msra.mxu0 %v933
        %1005 = vmatprep.mubr.f32.mxu0 %v895
        %1006 = vmatmul.mubr.f32.gmra.mrb[0].mxu0 %v894
        %v1007 = vpop.f32.mrb[0].mxu0
        %v1008 = vadd.f32 %v939, %v1007
        %v1009 = vpop.f32.mrb[0].mxu0
        %1010 = vmatprep.mubr.f32.mxu0 %v897
        %1011 = vmatmul.mubr.f32.gmra.mrb[0].mxu0 %v896
        %v1012 = vpop.f32.mrb[0].mxu0
        %v1013 = vadd.f32 %v939, %v1012
        %v1014 = vpop.f32.mrb[0].mxu0
        %1015 = vmatprep.mubr.f32.mxu0 %v899
        %1016 = vmatmul.mubr.f32.gmra.mrb[0].mxu0 %v898
        %v1017 = vpop.f32.mrb[0].mxu0
        %v1018 = vadd.f32 %v939, %v1017
        %v1019 = vpop.f32.mrb[0].mxu0
        %1020 = vmatprep.mubr.f32.mxu0 %v901
        %1021 = vmatmul.mubr.f32.gmra.mrb[0].mxu0 %v900
        %v1022 = vpop.f32.mrb[0].mxu0
        %v1023 = vadd.f32 %v939, %v1022
        %v1024 = vpop.f32.mrb[0].mxu0
        %1025 = vdwg.mxu0
        %vm1026 = vcmask 130048
        %1027 = vst.msk [vmem:[%s364] sm:$0xff] %vm1026, %v1008
        %1028 = vst.msk [vmem:[%s364 + $0x8] sm:$0xff] %vm1026, %v1013
        %1029 = vst.msk [vmem:[%s364 + $0x10] sm:$0xff] %vm1026, %v1018
        %1030 = vst.msk [vmem:[%s364 + $0x18] sm:$0xff] %vm1026, %v1023
        %s1031 = smul.u32 4, %s22
        %p1032 = scmp.lt.s32.totalorder %s1031, 7
        %s1033 = scalar_select %p1032, %s1031, 7
        %s1034 = smul.addr %s1033, 8
        %s1035 = scalar_lea.vmem %s9, %s1034
        // Predicated region
        $region65: #{tpu_custom_call.1} parent=55 // pred_check
          %p1036 = pneg %p234
        $region66: #{tpu_custom_call.1} parent=55 // pred_check_branch
          %1038 = sbr.rel (%p1036) target = $region68
        $region67: #{tpu_custom_call.1} parent=55 // pred_region
          %s1039 = smul.u32 4, %s22
        $region68: #{tpu_custom_call.1} parent=55 // pred_fallthru
          _
      $region56: #{tpu_custom_call.1} parent=5 // pred_fallthru
        _
      %p1040 = scmp.le.s32.totalorder 2, %s17
      // Predicated region
      $region69: #{tpu_custom_call.1} parent=5 // pred_check
        %p1041 = pneg %p1040
      $region70: #{tpu_custom_call.1} parent=5 // pred_check_branch
        %1043 = sbr.rel (%p1041) target = $region72
      $region71: #{tpu_custom_call.1} parent=5 // pred_region
        %s1044 = ssub.s32 %s17, 2
        // Predicated region
        $region73: #{tpu_custom_call.1} parent=71 // pred_check
          %p1045 = pneg %p240
        $region74: #{tpu_custom_call.1} parent=71 // pred_check_branch
          %1047 = sbr.rel (%p1045) target = $region76
        $region75: #{tpu_custom_call.1} parent=71 // pred_region
          %s1048 = smul.u32 4, %s23
          %p1049 = scmp.lt.s32.totalorder %s1048, 7
          %s1050 = scalar_select %p1049, %s1048, 7
          %s1051 = smul.addr %s1050, 8
          %s1052 = scalar_lea.vmem %s9, %s1051
        $region76: #{tpu_custom_call.1} parent=71 // pred_fallthru
          _
      $region72: #{tpu_custom_call.1} parent=5 // pred_fallthru
        _
    $region6: #{tpu_custom_call.1} parent=1 // loop_footer
      %s21 = sadd.s32 1, %s17
    $region7: #{tpu_custom_call.1} parent=1 // loop_footer_branch
      %16 = sbr.rel target = $region3
    $region8: #{tpu_custom_call.1} parent=1 // loop_exit
      _
    %1053 = vsyncpa [#allocation3], 1
    %s1054 = scalar_lea.sflag [#allocation3], 1
    %1055 = vsyncpa %s1054, 1
    %1056 = vsyncpa [#allocation5], 1

</llo_original>
